<compile_context>
chip_gen: v7x
topology: tpu7x:2x2x1
jax: 0.10.0
libtpu: 0.0.40
codegen_flags: <defaults>
</compile_context>

<pallas_src>
import math

import jax
import jax.numpy as jnp
import numpy as np
from jax import lax
from jax.experimental import pallas as pl
from jax.experimental.pallas import tpu as pltpu

_MIB = 1 << 20


# ---------------------------------------------------------------------------
# small helpers
# ---------------------------------------------------------------------------
def _vmem_capacity_bytes():
    try:
        return int(pltpu.get_tpu_info().vmem_capacity_bytes)
    except Exception:
        return 64 * _MIB  # conservative: v7x physical VMEM


def _vmem_limit(need_bytes, cap):
    # clamp below physical VMEM (important on v7x, 64 MiB), keep headroom
    return int(min(int(cap * 0.9), max(32 * _MIB, need_bytes + 16 * _MIB)))


def _round_up(x, m):
    return ((x + m - 1) // m) * m


def _pick_v_chunk(V, tile_n, K):
    # chunk of the V axis for the GL1 reduction: multiple of 128 dividing V,
    # with the (tile_n, K, chunk) f32 intermediate bounded (~8 MiB).
    budget = 8 * _MIB
    for cand in (1024, 512, 256, 128):
        if V % cand == 0 and V > cand and tile_n * K * cand * 4 <= budget:
            return cand
    return V


def _pick_tile_n(N, V, K, H, w_itemsize, vmem_cap):
    """Pick the batch tile: fill the MXU / HBM pipeline but fit VMEM."""
    budget = int(vmem_cap * 0.55)
    resident = (w_itemsize * (V * H + H * H + 2 * H * K)   # weights (bf16/f32)
                + 4 * (2 * H + 2 * K)                      # biases
                + w_itemsize * K * V                       # beta
                + 4 * K * V)                               # c

    def need(t):
        tiles = 2 * (t * K * V + 2 * t * V * 4)            # dbl-buffered gpbin + bows + nbows
        vch = _pick_v_chunk(V, t, K)
        work = (3 * t * V * 4 + 2 * t * H * 4 + 6 * t * K * 4
                + 2 * t * K * vch * 4)                     # GL1 chunk intermediate
        return resident + tiles + work

    t_fit = 8
    for cand in (256, 192, 128, 96, 64, 48, 32, 24, 16, 8):
        if need(cand) <= budget:
            t_fit = cand
            break
    # balance tiles across the batch (minimizes padding, keeps grid >= 2 for
    # the v7x megacore when N is large)
    g = max(1, -(-N // t_fit))
    t = max(8, min(t_fit, _round_up(-(-N // g), 8)))
    return t, need(t)


# ---------------------------------------------------------------------------
# Setup pass A1: beta (K, V) + GL2 per topic.  Runs once per forward.
# ---------------------------------------------------------------------------
def _make_beta_gl2_kernel(lambda_alpha):
    lambda_alpha = float(lambda_alpha)

    def kernel(rho_ref, alphas_ref, gp_kv_ref, beta_ref, gl2_ref):
        f32 = jnp.float32
        # logit_kv[k, v] = sum_r alphas[k, r] * rho[v, r]  == (rho @ alphas.T).T
        logit_kv = lax.dot_general(alphas_ref[...], rho_ref[...],
                                   (((1,), (1,)), ((), ())),
                                   preferred_element_type=f32)       # (K, V)
        # softmax over the vocab axis (original dim 0) == lane axis here
        lm = jnp.max(logit_kv, axis=-1, keepdims=True)
        el = jnp.exp(logit_kv - lm)
        beta_kv = el / jnp.sum(el, axis=-1, keepdims=True)           # (K, V) f32
        beta_ref[...] = beta_kv.astype(beta_ref.dtype)

        gp_kv = gp_kv_ref[...]                                       # (K, V)
        d2 = gp_kv - jnp.where(gp_kv > 0, beta_kv, 0.0)
        gl2_ref[...] = (lambda_alpha * jnp.sum(d2 * d2, axis=1))[None, :]

    return kernel


# ---------------------------------------------------------------------------
# Setup pass A2: get_gamma + c = gamma^2 - 2*gp*gamma, gridded over V tiles,
# output written lane-dense as (K, V).  Runs once per forward.
# ---------------------------------------------------------------------------
def _gamma_c_kernel(w1t_ref, b1_ref, w2t_ref, b2_ref, wmut_ref, bmu_ref,
                    gp_vk_ref, c_ref):
    f32 = jnp.float32
    # TODO(synk): get_gamma's F.dropout (training defaults to True in PyTorch)
    # is treated as identity (deterministic / eval semantics) -- intentional.
    gw1 = jax.nn.softplus(w1t_ref[...] + b1_ref[...])                       # (Tv, H)
    gw2 = jax.nn.softplus(jnp.dot(gw1, w2t_ref[...],
                                  preferred_element_type=f32) + b2_ref[...])
    gl = jnp.dot(gw2, wmut_ref[...], preferred_element_type=f32) + bmu_ref[...]  # (Tv, K)
    gm = jnp.max(gl, axis=-1, keepdims=True)
    eg = jnp.exp(gl - gm)
    gamma = eg / jnp.sum(eg, axis=-1, keepdims=True)                        # (Tv, K)
    gp = gp_vk_ref[...]
    c_vk = gamma * gamma - 2.0 * gp * gamma                                 # (Tv, K)
    c_ref[...] = jnp.transpose(c_vk)                                        # (K, Tv)


# ---------------------------------------------------------------------------
# Batch pass B: gridded over the batch dimension N.
# ---------------------------------------------------------------------------
def _make_batch_kernel(num_topics, variance, v_chunk, num_v_chunks, compute_dtype):
    numt = float(num_topics)
    inv_var = 1.0 / float(variance)
    log_var = math.log(float(variance))

    def kernel(bows_ref, nbows_ref, gpbin_ref,
               w1t_ref, b1_ref, w2t_ref, b2_ref,
               wmut_ref, bmu_ref, wlst_ref, bls_ref,
               beta_ref, c_ref,
               recon_ref, kld_ref, gl1_ref):
        f32 = jnp.float32
        bows = bows_ref[...]                                            # (T, V) f32
        tile_n = bows.shape[0]

        # ---- encoder (eval: dropout = identity; reparameterize returns mu) ----
        x = nbows_ref[...].astype(compute_dtype)
        h1 = jnp.tanh(jnp.dot(x, w1t_ref[...], preferred_element_type=f32)
                      + b1_ref[...])                                    # (T, H) f32
        h2 = jnp.tanh(jnp.dot(h1.astype(compute_dtype), w2t_ref[...],
                              preferred_element_type=f32) + b2_ref[...])
        h2c = h2.astype(compute_dtype)
        mu = jnp.dot(h2c, wmut_ref[...], preferred_element_type=f32) + bmu_ref[...]
        logsigma = (jnp.dot(h2c, wlst_ref[...], preferred_element_type=f32)
                    + bls_ref[...])

        zm = jnp.max(mu, axis=-1, keepdims=True)
        ez = jnp.exp(mu - zm)
        theta = ez / jnp.sum(ez, axis=-1, keepdims=True)                # (T, K) f32

        # ---- decode + per-sample reconstruction loss ----
        res = jnp.dot(theta.astype(compute_dtype), beta_ref[...],
                      preferred_element_type=f32)                       # (T, V) f32
        preds = jnp.log(res + 1e-6)
        recon = -jnp.sum(preds * bows, axis=1)                          # (T,)
        recon_ref[...] = recon[None, None, :]

        # ---- per-sample KL divergence (prior: mean 0, var = variance) ----
        post_var = jnp.exp(logsigma)
        kld = 0.5 * (jnp.sum(post_var * inv_var + mu * mu * inv_var
                             + log_var - logsigma, axis=1) - numt)      # (T,)
        kld_ref[...] = kld[None, None, :]

        # ---- GL1 partial: s_n = sum_{v,k} [(gpbin>0) & (bows>0)] * c[k,v] ----
        # gpbin tile is (T, K, V) int8 with V on the lane axis; c is (K, V).
        # mask is 0/1 so a single int8->f32 convert + multiply replaces the old
        # convert + compare + select; bows>0 is applied after the K reduction.
        if num_v_chunks == 1:
            prod = gpbin_ref[...].astype(f32) * c_ref[...][None, :, :]  # (T, K, V)
            s_tv = jnp.sum(prod, axis=1)                                # (T, V)
            s_n = jnp.sum(jnp.where(bows > 0, s_tv, 0.0),
                          axis=1, keepdims=True)                        # (T, 1)
        else:
            def body(ci, acc):
                v0 = pl.multiple_of(ci * v_chunk, v_chunk)
                g = gpbin_ref[:, :, pl.ds(v0, v_chunk)].astype(f32)     # (T, K, cv)
                cc = c_ref[:, pl.ds(v0, v_chunk)]                       # (K, cv)
                s_tv = jnp.sum(g * cc[None, :, :], axis=1)              # (T, cv)
                b_tv = bows_ref[:, pl.ds(v0, v_chunk)]
                return acc + jnp.sum(jnp.where(b_tv > 0, s_tv, 0.0),
                                     axis=1, keepdims=True)
            s_n = lax.fori_loop(0, num_v_chunks, body,
                                jnp.zeros((tile_n, 1), f32))
        gl1_ref[...] = s_n.reshape(1, 1, -1)

    return kernel


# ---------------------------------------------------------------------------
# Wrapper.
# ---------------------------------------------------------------------------
def model_forward(bows, nbows, params, *, num_topics, variance=0.995,
                  lambda_theta=1.0, lambda_alpha=1.0,
                  compute_dtype=jnp.bfloat16, single_buffer_consts=True):
    f32 = jnp.float32
    bows = bows.astype(f32)
    nbows = nbows.astype(f32)
    N, V = bows.shape
    H = params["w1t"].shape[1]
    R = params["rho_w"].shape[1]
    K = int(num_topics)
    w_dt = jnp.dtype(compute_dtype)

    vmem_cap = _vmem_capacity_bytes()

    gp = params["gamma_prior"].astype(f32)                  # (V, K)
    gp_kv = gp.T                                            # constant-param host transpose
    # binary prior mask, int8, (N, K, V) so V sits on the vector lanes
    gpbin = params["gamma_prior_bin"][:N]
    gpbin_kv = jnp.transpose((gpbin > 0).astype(jnp.int8), (0, 2, 1))
    # TODO(synk): for production sizes gamma_prior_bin should be bit-packed
    # (K bits per (n, v) into int32 words) to shrink the dominant HBM stream
    # another 4-8x (biggest win on v5e); kept int8 here for clarity.

    w1t_c = params["w1t"].astype(compute_dtype)
    w2t_c = params["w2t"].astype(compute_dtype)
    wmut_c = params["wmut"].astype(compute_dtype)
    wlst_c = params["wlst"].astype(compute_dtype)

    def const_spec(shape):
        # grid-invariant blocks: single-buffer them (halves their VMEM footprint)
        if single_buffer_consts:
            return pl.BlockSpec(shape, lambda *_: (0,) * len(shape),
                                pipeline_mode=pl.Buffered(1))
        return pl.BlockSpec(shape, lambda *_: (0,) * len(shape))

    vmem = pl.BlockSpec(memory_space=pltpu.MemorySpace.VMEM)

    # ---------------- setup pass A1: beta + GL2 (runs once) ----------------
    a1_need = 4 * (V * R + K * R + 3 * K * V)
    beta_kv, gl2_row = pl.pallas_call(
        _make_beta_gl2_kernel(lambda_alpha),
        out_shape=(jax.ShapeDtypeStruct((K, V), compute_dtype),
                   jax.ShapeDtypeStruct((1, K), f32)),
        in_specs=[vmem, vmem, vmem],
        out_specs=(vmem, vmem),
        compiler_params=pltpu.CompilerParams(
            vmem_limit_bytes=_vmem_limit(a1_need, vmem_cap)),
    )(params["rho_w"].astype(f32), params["alphas_w"].astype(f32), gp_kv)

    # ---------------- setup pass A2: gamma / c, gridded over V --------------
    tile_v = V
    for cand in (512, 256, 128):
        if V % cand == 0 and V > cand:
            tile_v = cand
            break
    grid_v = V // tile_v
    a2_need = (2 * (tile_v * H * 4 + tile_v * K * 4 + K * tile_v * 4)
               + 4 * (H * H + 2 * H + H * K + K) + 3 * tile_v * H * 4)

    c_kv = pl.pallas_call(
        _gamma_c_kernel,
        out_shape=jax.ShapeDtypeStruct((K, V), f32),
        grid=(grid_v,),
        in_specs=[
            pl.BlockSpec((tile_v, H), lambda i: (i, 0)),    # w1t (f32)
            const_spec((1, H)),                             # b1
            const_spec((H, H)),                             # w2t
            const_spec((1, H)),                             # b2
            const_spec((H, K)),                             # wmut
            const_spec((1, K)),                             # bmu
            pl.BlockSpec((tile_v, K), lambda i: (i, 0)),    # gamma_prior (V, K)
        ],
        out_specs=pl.BlockSpec((K, tile_v), lambda i: (0, i)),
        compiler_params=pltpu.CompilerParams(
            dimension_semantics=("parallel",),
            vmem_limit_bytes=_vmem_limit(a2_need, vmem_cap)),
    )(params["w1t"].astype(f32), params["b1"].astype(f32),
      params["w2t"].astype(f32), params["b2"].astype(f32),
      params["wmut"].astype(f32), params["bmu"].astype(f32), gp)

    # ---------------- batch pass B, gridded over N ---------------------------
    tile_n, bytes_need = _pick_tile_n(N, V, K, H, w_dt.itemsize, vmem_cap)
    grid_n = -(-N // tile_n)
    n_pad = grid_n * tile_n - N
    if n_pad:
        bows_p = jnp.pad(bows, ((0, n_pad), (0, 0)))
        nbows_p = jnp.pad(nbows, ((0, n_pad), (0, 0)))
        gpbin_p = jnp.pad(gpbin_kv, ((0, n_pad), (0, 0), (0, 0)))
    else:
        bows_p, nbows_p, gpbin_p = bows, nbows, gpbin_kv

    v_chunk = _pick_v_chunk(V, tile_n, K)
    num_v_chunks = V // v_chunk

    # cost estimate: weights fetched once (constant-index blocks), batch tiles
    # once per grid step.
    weight_bytes = (w_dt.itemsize * (V * H + H * H + 2 * H * K + K * V)
                    + 4 * (2 * H + 2 * K) + 4 * K * V)
    tile_in_bytes = tile_n * (K * V + 2 * V * 4)
    cost = pl.CostEstimate(
        flops=int(2 * grid_n * tile_n * (V * H + H * H + 2 * H * K + K * V)
                  + 2 * grid_n * tile_n * V * K),
        transcendentals=int(grid_n * tile_n * (2 * H + 2 * K + V)),
        bytes_accessed=int(weight_bytes + grid_n * tile_in_bytes
                           + grid_n * 3 * tile_n * 4),
    )

    per_sample_out = pl.BlockSpec((1, 1, tile_n), lambda i: (i, 0, 0))
    out_shape = tuple(jax.ShapeDtypeStruct((grid_n, 1, tile_n), f32)
                      for _ in range(3))

    in_specs = [
        pl.BlockSpec((tile_n, V), lambda i: (i, 0)),        # bows (f32)
        pl.BlockSpec((tile_n, V), lambda i: (i, 0)),        # normalized bows (f32)
        pl.BlockSpec((tile_n, K, V), lambda i: (i, 0, 0)),  # gamma_prior_bin (int8)
        const_spec((V, H)),                                 # w1t (compute dtype)
        const_spec((1, H)),                                 # b1
        const_spec((H, H)),                                 # w2t
        const_spec((1, H)),                                 # b2
        const_spec((H, K)),                                 # wmut
        const_spec((1, K)),                                 # bmu
        const_spec((H, K)),                                 # wlst
        const_spec((1, K)),                                 # bls
        const_spec((K, V)),                                 # beta (K, V)
        const_spec((K, V)),                                 # c   (K, V) f32
    ]

    recon, kld, gl1p = pl.pallas_call(
        _make_batch_kernel(K, variance, v_chunk, num_v_chunks, compute_dtype),
        out_shape=out_shape,
        grid=(grid_n,),
        in_specs=in_specs,
        out_specs=(per_sample_out,) * 3,
        compiler_params=pltpu.CompilerParams(
            dimension_semantics=("parallel",),
            vmem_limit_bytes=_vmem_limit(bytes_need, vmem_cap)),
        cost_estimate=cost,
    )(bows_p, nbows_p, gpbin_p,
      w1t_c, params["b1"].astype(f32), w2t_c, params["b2"].astype(f32),
      wmut_c, params["bmu"].astype(f32), wlst_c, params["bls"].astype(f32),
      beta_kv, c_kv)

    # strip padding rows; the tiny final means are host glue
    recon = recon.reshape(-1)[:N]
    kld = kld.reshape(-1)[:N]
    gl1p = gl1p.reshape(-1)[:N]

    gp2_sum = jnp.sum(gp * gp)                              # constant-parameter glue
    gl1 = lambda_theta * (gp2_sum + gl1p.mean())
    return recon.mean(), kld.mean(), gl1, gl2_row.mean()


# ---------------------------------------------------------------------------
# Pure-jnp reference matching the PyTorch forward (eval mode).
# ---------------------------------------------------------------------------
def reference_forward(bows, nbows, params, *, num_topics, variance=0.995,
                      lambda_theta=1.0, lambda_alpha=1.0):
    w1t, b1 = params["w1t"], params["b1"]
    w2t, b2 = params["w2t"], params["b2"]
    wmut, bmu = params["wmut"], params["bmu"]
    wlst, bls = params["wlst"], params["bls"]
    h1 = jnp.tanh(nbows @ w1t + b1)
    h2 = jnp.tanh(h1 @ w2t + b2)
    mu = h2 @ wmut + bmu
    logsigma = h2 @ wlst + bls
    theta = jax.nn.softmax(mu, axis=-1)

    logit = params["rho_w"] @ params["alphas_w"].T          # (V, K)
    beta = jax.nn.softmax(logit, axis=0).T                  # (K, V)

    preds = jnp.log(theta @ beta + 1e-6)
    recon = -(preds * bows).sum(1)

    post_var = jnp.exp(logsigma)
    kld = 0.5 * ((post_var / variance + mu * mu / variance
                  + jnp.log(variance) - logsigma).sum(1) - num_topics)

    gw1 = jax.nn.softplus(w1t + b1)
    gw2 = jax.nn.softplus(gw1 @ w2t + b2)
    gamma_mean = jax.nn.softmax(gw2 @ wmut + bmu, axis=-1)  # (V, K)

    gp = params["gamma_prior"]
    gpbin = params["gamma_prior_bin"]
    x_bool = (bows > 0)[:, :, None]
    xg = jnp.logical_and(gpbin > 0, x_bool).astype(jnp.float32)
    gl1 = lambda_theta * (((gp[None] - xg * gamma_mean[None]) ** 2).sum((1, 2)))

    beta_bool = (gp > 0).T.astype(jnp.float32)
    gl2 = lambda_alpha * (((gp.T - beta_bool * beta) ** 2).sum(1))

    return recon.mean(), kld.mean(), gl1.mean(), gl2.mean()


if __name__ == "__main__":
    # small shapes consistent with the module
    N, V, H, K, R = 8, 64, 32, 16, 24

    key = jax.random.PRNGKey(0)
    ks = jax.random.split(key, 16)
    f32 = jnp.float32

    params = {
        "w1t": 0.05 * jax.random.normal(ks[0], (V, H), f32),   # en1_fc.weight.T
        "b1": 0.01 * jax.random.normal(ks[1], (1, H), f32),
        "w2t": 0.05 * jax.random.normal(ks[2], (H, H), f32),   # en2_fc.weight.T
        "b2": 0.01 * jax.random.normal(ks[3], (1, H), f32),
        "wmut": 0.05 * jax.random.normal(ks[4], (H, K), f32),  # mu_q_theta.weight.T
        "bmu": 0.01 * jax.random.normal(ks[5], (1, K), f32),
        "wlst": 0.05 * jax.random.normal(ks[6], (H, K), f32),  # logsigma_q_theta.weight.T
        "bls": 0.01 * jax.random.normal(ks[7], (1, K), f32),
        "rho_w": 0.1 * jax.random.normal(ks[8], (V, R), f32),      # rho.weight (V, R)
        "alphas_w": 0.1 * jax.random.normal(ks[9], (K, R), f32),   # alphas.weight (K, R)
        "gamma_prior": (jax.random.uniform(ks[10], (V, K)) > 0.7).astype(f32)
        * jax.random.uniform(ks[11], (V, K), f32),
        "gamma_prior_bin": (jax.random.uniform(ks[12], (N, V, K)) > 0.5).astype(jnp.int8),
    }

    bows = jax.random.randint(ks[13], (N, V), 0, 5).astype(f32)
    row_sum = jnp.maximum(bows.sum(axis=1, keepdims=True), 1.0)
    nbows = bows / row_sum

    ref = jax.block_until_ready(
        reference_forward(bows, nbows, params, num_topics=K,
                          variance=0.995, lambda_theta=1.0, lambda_alpha=1.0))

    def run(compute_dtype, single_buffer):
        out = model_forward(bows, nbows, params, num_topics=K,
                            variance=0.995, lambda_theta=1.0, lambda_alpha=1.0,
                            compute_dtype=compute_dtype,
                            single_buffer_consts=single_buffer)
        return jax.block_until_ready(out)

    def close(out, tol):
        return all(np.allclose(np.asarray(a), np.asarray(b), rtol=tol, atol=tol)
                   for a, b in zip(out, ref))

    # Resolve whether single-buffered constant specs (pipeline_mode=Buffered(1))
    # are supported on this jax/libtpu; fall back to default double-buffering.
    sb = True
    try:
        out_f32 = run(jnp.float32, True)
        if not close(out_f32, 1e-4):
            raise ValueError("single-buffered constant path mismatch")
    except Exception:
        sb = False
        out_f32 = run(jnp.float32, False)

    if not close(out_f32, 1e-4):
        raise SystemExit(f"MISMATCH(f32) kernel={out_f32} ref={ref}")

    # bf16 MXU path (default perf configuration); loose tolerance for bf16.
    out_bf16 = run(jnp.bfloat16, sb)
    if not close(out_bf16, 5e-2):
        raise SystemExit(f"MISMATCH(bf16) kernel={out_bf16} ref={ref}")

    print("KERNEL_OK")
</pallas_src>

<mosaic_0001>
module attributes {stable_mosaic.version = 11 : i64} {
  func.func @kernel(%arg0: memref<64x24xf32, #tpu.memory_space<vmem>>, %arg1: memref<16x24xf32, #tpu.memory_space<vmem>>, %arg2: memref<16x64xf32, #tpu.memory_space<vmem>>, %arg3: memref<16x64xf32, #tpu.memory_space<vmem>>, %arg4: memref<1x16xf32, #tpu.memory_space<vmem>>) attributes {dimension_semantics = [], scalar_prefetch = 0 : i64, scratch_operands = 0 : i64, tpu.core_type = #tpu.core_type<tc>} {
    %c0 = arith.constant 0 : index
    %c0_0 = arith.constant 0 : index
    %0 = vector.load %arg1[%c0, %c0_0] : memref<16x24xf32, #tpu.memory_space<vmem>>, vector<16x24xf32>
    %c0_1 = arith.constant 0 : index
    %c0_2 = arith.constant 0 : index
    %1 = vector.load %arg0[%c0_1, %c0_2] : memref<64x24xf32, #tpu.memory_space<vmem>>, vector<64x24xf32>
    %cst = arith.constant dense<0.000000e+00> : vector<16x64xf32>
    %2 = tpu.matmul %0, %1, %cst {dimension_numbers = #tpu.dot_dimension_numbers<[1], [1], [0], [0], [0, 0, 1, 0], [], []>} : vector<16x24xf32>, vector<64x24xf32>, vector<16x64xf32> -> vector<16x64xf32>
    %cst_3 = arith.constant dense<0xFF800000> : vector<16xf32>
    %3 = vector.multi_reduction <maximumf>, %2, %cst_3 [1] : vector<16x64xf32> to vector<16xf32>
    %4 = vector.shape_cast %3 : vector<16xf32> to vector<16x1xf32>
    %5 = vector.broadcast %4 : vector<16x1xf32> to vector<16x64xf32>
    %6 = arith.subf %2, %5 : vector<16x64xf32>
    %7 = math.exp %6 : vector<16x64xf32>
    %cst_4 = arith.constant dense<0.000000e+00> : vector<16xf32>
    %8 = vector.multi_reduction <add>, %7, %cst_4 [1] : vector<16x64xf32> to vector<16xf32>
    %9 = vector.shape_cast %8 : vector<16xf32> to vector<16x1xf32>
    %10 = vector.broadcast %9 : vector<16x1xf32> to vector<16x64xf32>
    %11 = arith.divf %7, %10 : vector<16x64xf32>
    %c0_5 = arith.constant 0 : index
    %c0_6 = arith.constant 0 : index
    %12 = vector.load %arg3[%c0_5, %c0_6] : memref<16x64xf32, #tpu.memory_space<vmem>>, vector<16x64xf32>
    tpu.vector_store %arg3[%c0_5, %c0_6], %11 {strides = array<i32>} : memref<16x64xf32, #tpu.memory_space<vmem>>, vector<16x64xf32>,
    %c0_7 = arith.constant 0 : index
    %c0_8 = arith.constant 0 : index
    %13 = vector.load %arg2[%c0_7, %c0_8] : memref<16x64xf32, #tpu.memory_space<vmem>>, vector<16x64xf32>
    %cst_9 = arith.constant 0.000000e+00 : f32
    %14 = vector.broadcast %cst_9 : f32 to vector<16x64xf32>
    %15 = arith.cmpf ogt, %13, %14 : vector<16x64xf32>
    %cst_10 = arith.constant 0.000000e+00 : f32
    %16 = vector.broadcast %cst_10 : f32 to vector<16x64xf32>
    %17 = arith.select %15, %11, %16 : vector<16x64xi1>, vector<16x64xf32>
    %18 = arith.subf %13, %17 : vector<16x64xf32>
    %19 = arith.mulf %18, %18 : vector<16x64xf32>
    %cst_11 = arith.constant dense<0.000000e+00> : vector<16xf32>
    %20 = vector.multi_reduction <add>, %19, %cst_11 [1] : vector<16x64xf32> to vector<16xf32>
    %cst_12 = arith.constant 1.000000e+00 : f32
    %21 = vector.broadcast %cst_12 : f32 to vector<16xf32>
    %22 = arith.mulf %21, %20 : vector<16xf32>
    %23 = vector.shape_cast %22 : vector<16xf32> to vector<1x16xf32>
    %c0_13 = arith.constant 0 : index
    %c0_14 = arith.constant 0 : index
    %24 = vector.load %arg4[%c0_13, %c0_14] : memref<1x16xf32, #tpu.memory_space<vmem>>, vector<1x16xf32>
    tpu.vector_store %arg4[%c0_13, %c0_14], %23 {strides = array<i32>} : memref<1x16xf32, #tpu.memory_space<vmem>>, vector<1x16xf32>,
    return
  }
}

module attributes {stable_mosaic.version = 11 : i64} {
  func.func @kernel(%arg0: memref<64x24xf32, #tpu.memory_space<vmem>>, %arg1: memref<16x24xf32, #tpu.memory_space<vmem>>, %arg2: memref<16x64xf32, #tpu.memory_space<vmem>>, %arg3: memref<16x64xf32, #tpu.memory_space<vmem>>, %arg4: memref<1x16xf32, #tpu.memory_space<vmem>>) attributes {dimension_semantics = [], scalar_prefetch = 0 : i64, scratch_operands = 0 : i64, tpu.core_type = #tpu.core_type<tc>} {
    %c0 = arith.constant 0 : index
    %c0_0 = arith.constant 0 : index
    %0 = vector.load %arg1[%c0, %c0_0] : memref<16x24xf32, #tpu.memory_space<vmem>>, vector<16x24xf32>
    %c0_1 = arith.constant 0 : index
    %c0_2 = arith.constant 0 : index
    %1 = vector.load %arg0[%c0_1, %c0_2] : memref<64x24xf32, #tpu.memory_space<vmem>>, vector<64x24xf32>
    %cst = arith.constant dense<0.000000e+00> : vector<16x64xf32>
    %2 = tpu.matmul %0, %1, %cst {dimension_numbers = #tpu.dot_dimension_numbers<[1], [1], [0], [0], [0, 0, 1, 0], [], []>} : vector<16x24xf32>, vector<64x24xf32>, vector<16x64xf32> -> vector<16x64xf32>
    %cst_3 = arith.constant dense<0xFF800000> : vector<16xf32>
    %3 = vector.multi_reduction <maximumf>, %2, %cst_3 [1] : vector<16x64xf32> to vector<16xf32>
    %4 = vector.shape_cast %3 : vector<16xf32> to vector<16x1xf32>
    %5 = vector.broadcast %4 : vector<16x1xf32> to vector<16x64xf32>
    %6 = arith.subf %2, %5 : vector<16x64xf32>
    %7 = math.exp %6 : vector<16x64xf32>
    %cst_4 = arith.constant dense<0.000000e+00> : vector<16xf32>
    %8 = vector.multi_reduction <add>, %7, %cst_4 [1] : vector<16x64xf32> to vector<16xf32>
    %9 = vector.shape_cast %8 : vector<16xf32> to vector<16x1xf32>
    %10 = vector.broadcast %9 : vector<16x1xf32> to vector<16x64xf32>
    %11 = arith.divf %7, %10 : vector<16x64xf32>
    %c0_5 = arith.constant 0 : index
    %c0_6 = arith.constant 0 : index
    %12 = vector.load %arg3[%c0_5, %c0_6] : memref<16x64xf32, #tpu.memory_space<vmem>>, vector<16x64xf32>
    tpu.vector_store %arg3[%c0_5, %c0_6], %11 {strides = array<i32>} : memref<16x64xf32, #tpu.memory_space<vmem>>, vector<16x64xf32>,
    %c0_7 = arith.constant 0 : index
    %c0_8 = arith.constant 0 : index
    %13 = vector.load %arg2[%c0_7, %c0_8] : memref<16x64xf32, #tpu.memory_space<vmem>>, vector<16x64xf32>
    %cst_9 = arith.constant 0.000000e+00 : f32
    %14 = vector.broadcast %cst_9 : f32 to vector<16x64xf32>
    %15 = arith.cmpf ogt, %13, %14 : vector<16x64xf32>
    %cst_10 = arith.constant 0.000000e+00 : f32
    %16 = vector.broadcast %cst_10 : f32 to vector<16x64xf32>
    %17 = arith.select %15, %11, %16 : vector<16x64xi1>, vector<16x64xf32>
    %18 = arith.subf %13, %17 : vector<16x64xf32>
    %19 = arith.mulf %18, %18 : vector<16x64xf32>
    %cst_11 = arith.constant dense<0.000000e+00> : vector<16xf32>
    %20 = vector.multi_reduction <add>, %19, %cst_11 [1] : vector<16x64xf32> to vector<16xf32>
    %cst_12 = arith.constant 1.000000e+00 : f32
    %21 = vector.broadcast %cst_12 : f32 to vector<16xf32>
    %22 = arith.mulf %21, %20 : vector<16xf32>
    %23 = vector.shape_cast %22 : vector<16xf32> to vector<1x16xf32>
    %c0_13 = arith.constant 0 : index
    %c0_14 = arith.constant 0 : index
    %24 = vector.load %arg4[%c0_13, %c0_14] : memref<1x16xf32, #tpu.memory_space<vmem>>, vector<1x16xf32>
    tpu.vector_store %arg4[%c0_13, %c0_14], %23 {strides = array<i32>} : memref<1x16xf32, #tpu.memory_space<vmem>>, vector<1x16xf32>,
    return
  }
}

</mosaic_0001>

<llo_original>
// kernel: tpu_custom_call.1
$region0: #{tpu_custom_call.1}
  #allocation0 [shape = 'u32[]', space=smem, size = 0x4, offset = 0x4, fixed_abs, tag = 'smem constant byte address 0x4 - core index']
  #allocation1 [shape = 'u32[144,128]{1,0:T(1,128)}', space=vmem, size = 0x12000, scoped, tag = 'internal scratch']
  %s0 = inlined_call_operand.vmem [shape: f32[64,24], index: 0, kind: input, shape index: {}]
  %s1 = inlined_call_operand.vmem [shape: f32[16,24], index: 1, kind: input, shape index: {}]
  %s2 = inlined_call_operand.vmem [shape: f32[16,64], index: 2, kind: input, shape index: {}]
  %s3 = inlined_call_operand.hbm [shape: f32[16,64], index: 3, kind: output, shape index: {0}]
  %s4 = inlined_call_operand.hbm [shape: f32[1,16], index: 4, kind: output, shape index: {1}]
  %5 = xla_tuple %s3, %s4
  %s6 = sld [smem:[#allocation0]]
  $region30: #{tpu_custom_call.1} parent=0
    _
  %s8 = ssub.s32 1, %s6
  %s9 = scalar_select 0, %s8, %s6
  $region1: #{tpu_custom_call.1} parent=0
    #allocation2 [shape = 'u8[8192]{0}', space=vmem, size = 0x2000, scoped, tag = 'output window, operand 0, single buffered']
    #allocation3 [shape = 's32[1]{0}', space=sflag, size = 0x4, scoped, tag = 'scoped memory for tpu_custom_call.1']
    #allocation4 [shape = 'u8[512]{0}', space=vmem, size = 0x400, scoped, tag = 'output window, operand 1, single buffered']
    #allocation5 [shape = 's32[1]{0}', space=sflag, size = 0x4, scoped, tag = 'scoped memory for tpu_custom_call.1']
    %10 = vsyncpa [#allocation3], 0
    %11 = vsyncpa [#allocation5], 0
    // Predicated region
    $region2: #{tpu_custom_call.1} parent=1 // pred_check
      _
    $region3: #{tpu_custom_call.1} parent=1 // pred_check_branch
      %13 = sbr.rel (0) target = $region5
    $region4: #{tpu_custom_call.1} parent=1 // pred_region
      _
    $region5: #{tpu_custom_call.1} parent=1 // pred_fallthru
      _
    // Predicated region
    $region6: #{tpu_custom_call.1} parent=1 // pred_check
      _
    $region7: #{tpu_custom_call.1} parent=1 // pred_check_branch
      %15 = sbr.rel (0) target = $region9
    $region8: #{tpu_custom_call.1} parent=1 // pred_region
      _
    $region9: #{tpu_custom_call.1} parent=1 // pred_fallthru
      _
    // Predicated region
    $region10: #{tpu_custom_call.1} parent=1 // pred_check
      _
    $region11: #{tpu_custom_call.1} parent=1 // pred_check_branch
      %17 = sbr.rel (0) target = $region13
    $region12: #{tpu_custom_call.1} parent=1 // pred_region
      _
    $region13: #{tpu_custom_call.1} parent=1 // pred_fallthru
      _
    %v18 = vld [vmem:[%s1] sm:$0xff]
    %v19 = vld [vmem:[%s1 + $0x8] sm:$0xff]
    %v20 = vld [vmem:[%s0] sm:$0xff]
    %v21 = vld [vmem:[%s0 + $0x8] sm:$0xff]
    %v22 = vld [vmem:[%s0 + $0x10] sm:$0xff]
    %v23 = vld [vmem:[%s0 + $0x18] sm:$0xff]
    %v24 = vld [vmem:[%s0 + $0x20] sm:$0xff]
    %v25 = vld [vmem:[%s0 + $0x28] sm:$0xff]
    %v26 = vld [vmem:[%s0 + $0x30] sm:$0xff]
    %v27 = vld [vmem:[%s0 + $0x38] sm:$0xff]
    %vm28 = vcmask 195584
    %v30 = vsel %vm28, %v18, 0
    %v33 = vsel %vm28, %v19, 0
    %v36 = vsel %vm28, %v20, 0
    %v39 = vsel %vm28, %v21, 0
    %v42 = vsel %vm28, %v22, 0
    %v45 = vsel %vm28, %v23, 0
    %v48 = vsel %vm28, %v24, 0
    %v51 = vsel %vm28, %v25, 0
    %v54 = vsel %vm28, %v26, 0
    %v57 = vsel %vm28, %v27, 0
    %59 = vmatprep.subr.mxu0 0.0
    %60 = vmatpush1.xpose.msra.mxu0 %v36
    %61 = vmatprep.subr.mxu0 0.0
    %62 = vmatpush1.xpose.msra.mxu0 %v39
    %63 = vmatprep.subr.mxu0 0.0
    %64 = vmatpush1.xpose.msra.mxu0 %v42
    %65 = vmatprep.subr.mxu0 0.0
    %66 = vmatpush1.xpose.msra.mxu0 %v45
    %67 = vmatprep.subr.mxu0 0.0
    %68 = vmatpush1.xpose.msra.mxu0 %v48
    %69 = vmatprep.subr.mxu0 0.0
    %70 = vmatpush1.xpose.msra.mxu0 %v51
    %71 = vmatprep.subr.mxu0 0.0
    %72 = vmatpush1.xpose.msra.mxu0 %v54
    %73 = vmatprep.subr.mxu0 0.0
    %74 = vmatpush1.xpose.msra.mxu0 %v57
    %75 = vmatprep.subr.mxu0 0.0
    %76 = vmatpush1.xpose.msra.mxu0 0.0
    %77 = vmatprep.subr.mxu0 0.0
    %78 = vmatpush1.xpose.msra.mxu0 0.0
    %79 = vmatprep.subr.mxu0 0.0
    %80 = vmatpush1.xpose.msra.mxu0 0.0
    %81 = vmatprep.subr.mxu0 0.0
    %82 = vmatpush1.xpose.msra.mxu0 0.0
    %83 = vmatprep.subr.mxu0 0.0
    %84 = vmatpush1.xpose.msra.mxu0 0.0
    %85 = vmatprep.subr.mxu0 0.0
    %86 = vmatpush1.xpose.msra.mxu0 0.0
    %87 = vmatprep.subr.mxu0 0.0
    %88 = vmatpush1.xpose.msra.mxu0 0.0
    %89 = vmatprep.subr.mxu0 0.0
    %90 = vmatpush1.xpose.msra.mxu0 0.0
    %91 = vmatprep.subr.mxu0 0.0
    %92 = vmatpush1.xpose.msra.mxu0 0.0
    %93 = vmatprep.subr.mxu0 0.0
    %94 = vmatpush1.xpose.msra.mxu0 0.0
    %95 = vmatprep.subr.mxu0 0.0
    %96 = vmatpush1.xpose.msra.mxu0 0.0
    %97 = vmatprep.subr.mxu0 0.0
    %98 = vmatpush1.xpose.msra.mxu0 0.0
    %99 = vmatprep.subr.mxu0 0.0
    %100 = vmatpush1.xpose.msra.mxu0 0.0
    %101 = vmatprep.subr.mxu0 0.0
    %102 = vmatpush1.xpose.msra.mxu0 0.0
    %103 = vmatprep.subr.mxu0 0.0
    %104 = vmatpush1.xpose.msra.mxu0 0.0
    %105 = vmatprep.subr.mxu0 0.0
    %106 = vmatpush1.xpose.msra.mxu0 0.0
    %107 = vmatprep.subr.mxu0 0.0
    %108 = vmatpush1.xpose.msra.mxu0 0.0
    %109 = vmatprep.subr.mxu0 0.0
    %110 = vmatpush1.xpose.msra.mxu0 0.0
    %111 = vmatprep.subr.mxu0 0.0
    %112 = vmatpush1.xpose.msra.mxu0 0.0
    %113 = vmatprep.subr.mxu0 0.0
    %114 = vmatpush1.xpose.msra.mxu0 0.0
    %115 = vmatprep.subr.mxu0 0.0
    %116 = vmatpush1.xpose.msra.mxu0 0.0
    %117 = vmatprep.subr.mxu0 0.0
    %118 = vmatpush1.xpose.msra.mxu0 0.0
    %119 = vmatprep.subr.mxu0 0.0
    %120 = vmatpush1.xpose.msra.mxu0 0.0
    %121 = vmatprep.subr.mxu0 0.0
    %122 = vmatpush1.xpose.msra.mxu0 0.0
    %123 = vmatprep.mubr.f32.mxu0 0.0
    %124 = vmatmul.mubr.f32.gmra.mrb[0].mxu0 %v30
    %v125 = vpop.f32.mrb[0].mxu0
    %v126 = vadd.f32 0.0, %v125
    %v127 = vpop.f32.mrb[0].mxu0
    %128 = vmatprep.mubr.f32.mxu0 0.0
    %129 = vmatmul.mubr.f32.gmra.mrb[0].mxu0 %v33
    %v130 = vpop.f32.mrb[0].mxu0
    %v131 = vadd.f32 0.0, %v130
    %v132 = vpop.f32.mrb[0].mxu0
    %133 = vdwg.mxu0
    %vm134 = vcmask 523264
    %v135 = vsel %vm134, %v126, -inf
    %136 = vmax.xlane.f32.xlu0 %v135
    %v137 = vpop.xlane.xlu0 %136
    %v138 = vsel %vm134, %v131, -inf
    %139 = vmax.xlane.f32.xlu0 %v138
    %v140 = vpop.xlane.xlu0 %139
    %v141 = vsub.f32 %v126, %v137
    %v142 = vsub.f32 %v131, %v140
    %v143 = vmul.f32 %v141, 1.442695
    %v144 = vpow.pop %v143
    %v145 = vmul.f32 %v142, 1.442695
    %v146 = vpow.pop %v145
    %v147 = vsel %vm134, %v144, 0.0
    %148 = vadd.xlane.f32.xlu0 %v147
    %v149 = vpop.xlane.xlu0 %148
    %v150 = vsel %vm134, %v146, 0.0
    %151 = vadd.xlane.f32.xlu0 %v150
    %v152 = vpop.xlane.xlu0 %151
    %v153 = vrcp.pop %v149
    %v154 = vmul.f32 %v144, %v153
    %v155 = vrcp.pop %v152
    %v156 = vmul.f32 %v146, %v155
    %157 = vst.msk [vmem:[#allocation2] sm:$0xff] %vm134, %v154
    %158 = vst.msk [vmem:[#allocation2 + $0x8] sm:$0xff] %vm134, %v156
    %v159 = vld [vmem:[%s2] sm:$0xff]
    %v160 = vld [vmem:[%s2 + $0x8] sm:$0xff]
    %vm161 = vcmp.gt.f32.partialorder %v159, 0.0
    %vm162 = vcmp.gt.f32.partialorder %v160, 0.0
    %v163 = vsel %vm161, %v154, 0.0
    %v164 = vsel %vm162, %v156, 0.0
    %v165 = vsub.f32 %v159, %v163
    %v166 = vsub.f32 %v160, %v164
    %v167 = vmul.f32 %v165, %v165
    %v168 = vmul.f32 %v166, %v166
    %v169 = vsel %vm134, %v167, 0.0
    %170 = vadd.xlane.f32.xlu0 %v169
    %v171 = vpop.xlane.xlu0 %170
    %v172 = vsel %vm134, %v168, 0.0
    %173 = vadd.xlane.f32.xlu0 %v172
    %v174 = vpop.xlane.xlu0 %173
    %v177 = vlaneseq
    %v178 = vand.u32 %v177, 127
    %v179 = vlaneseq
    %v180 = vshrl.u32 %v179, 7
    %v181 = vsub.s32 %v178, %v180
    %v182 = vrot.slane %v171, %v181
    %v183 = vadd.s32 %v178, 4294967288
    %v184 = vlaneseq
    %v185 = vshrl.u32 %v184, 7
    %v186 = vsub.s32 %v183, %v185
    %v187 = vrot.slane %v174, %v186
    %vm188 = vcmask 130112
    %v189 = vsel %vm188, %v187, %v182
    %vm191 = vcmask 122880
    %192 = vst.msk [vmem:[#allocation4] sm:$0x1] %vm191, %v189
    // Predicated region
    $region14: #{tpu_custom_call.1} parent=1 // pred_check
      _
    $region15: #{tpu_custom_call.1} parent=1 // pred_check_branch
      %194 = sbr.rel (0) target = $region17
    $region16: #{tpu_custom_call.1} parent=1 // pred_region
      %s196 = ssub.s32 256, 256
      %197 = vsyncadd [#allocation3], %s196
      %s198 = sshll.u32 [#allocation2], 4
      %s199 = int_to_ptr.vmem [resolvable:$true] %s198
      %204 = dma.vmem_to_hbm [thread:$0]  %s199, 256, %s3, [#allocation3], 128, 128, 8
    $region17: #{tpu_custom_call.1} parent=1 // pred_fallthru
      _
    // Predicated region
    $region18: #{tpu_custom_call.1} parent=1 // pred_check
      _
    $region19: #{tpu_custom_call.1} parent=1 // pred_check_branch
      %206 = sbr.rel (0) target = $region21
    $region20: #{tpu_custom_call.1} parent=1 // pred_region
      %s208 = ssub.s32 16, 16
      %209 = vsyncadd [#allocation5], %s208
      %s211 = sshll.u32 [#allocation4], 4
      %s212 = int_to_ptr.vmem [resolvable:$true] %s211
      %214 = dma.vmem_to_hbm [thread:$0]  %s212, 16, %s4, [#allocation5]
    $region21: #{tpu_custom_call.1} parent=1 // pred_fallthru
      _
    // Predicated region
    $region22: #{tpu_custom_call.1} parent=1 // pred_check
      _
    $region23: #{tpu_custom_call.1} parent=1 // pred_check_branch
      %216 = sbr.rel (0) target = $region25
    $region24: #{tpu_custom_call.1} parent=1 // pred_region
      %217 = dma.done [#allocation3], 256
    $region25: #{tpu_custom_call.1} parent=1 // pred_fallthru
      _
    // Predicated region
    $region26: #{tpu_custom_call.1} parent=1 // pred_check
      _
    $region27: #{tpu_custom_call.1} parent=1 // pred_check_branch
      %219 = sbr.rel (0) target = $region29
    $region28: #{tpu_custom_call.1} parent=1 // pred_region
      %220 = dma.done [#allocation5], 16
    $region29: #{tpu_custom_call.1} parent=1 // pred_fallthru
      _
    %221 = vsyncpa [#allocation3], 1
    %222 = vsyncpa [#allocation5], 1

// kernel: tpu_custom_call.1
$region0: #{tpu_custom_call.1}
  #allocation0 [shape = 'u32[]', space=smem, size = 0x4, offset = 0x4, fixed_abs, tag = 'smem constant byte address 0x4 - core index']
  #allocation1 [shape = 'u32[144,128]{1,0:T(1,128)}', space=vmem, size = 0x12000, scoped, tag = 'internal scratch']
  %s0 = inlined_call_operand.vmem [shape: f32[64,24], index: 0, kind: input, shape index: {}]
  %s1 = inlined_call_operand.vmem [shape: f32[16,24], index: 1, kind: input, shape index: {}]
  %s2 = inlined_call_operand.vmem [shape: f32[16,64], index: 2, kind: input, shape index: {}]
  %s3 = inlined_call_operand.hbm [shape: f32[16,64], index: 3, kind: output, shape index: {0}]
  %s4 = inlined_call_operand.hbm [shape: f32[1,16], index: 4, kind: output, shape index: {1}]
  %5 = xla_tuple %s3, %s4
  %s6 = sld [smem:[#allocation0]]
  $region30: #{tpu_custom_call.1} parent=0
    _
  %s8 = ssub.s32 1, %s6
  %s9 = scalar_select 0, %s8, %s6
  $region1: #{tpu_custom_call.1} parent=0
    #allocation2 [shape = 'u8[8192]{0}', space=vmem, size = 0x2000, scoped, tag = 'output window, operand 0, single buffered']
    #allocation3 [shape = 's32[1]{0}', space=sflag, size = 0x4, scoped, tag = 'scoped memory for tpu_custom_call.1']
    #allocation4 [shape = 'u8[512]{0}', space=vmem, size = 0x400, scoped, tag = 'output window, operand 1, single buffered']
    #allocation5 [shape = 's32[1]{0}', space=sflag, size = 0x4, scoped, tag = 'scoped memory for tpu_custom_call.1']
    %10 = vsyncpa [#allocation3], 0
    %11 = vsyncpa [#allocation5], 0
    // Predicated region
    $region2: #{tpu_custom_call.1} parent=1 // pred_check
      _
    $region3: #{tpu_custom_call.1} parent=1 // pred_check_branch
      %13 = sbr.rel (0) target = $region5
    $region4: #{tpu_custom_call.1} parent=1 // pred_region
      _
    $region5: #{tpu_custom_call.1} parent=1 // pred_fallthru
      _
    // Predicated region
    $region6: #{tpu_custom_call.1} parent=1 // pred_check
      _
    $region7: #{tpu_custom_call.1} parent=1 // pred_check_branch
      %15 = sbr.rel (0) target = $region9
    $region8: #{tpu_custom_call.1} parent=1 // pred_region
      _
    $region9: #{tpu_custom_call.1} parent=1 // pred_fallthru
      _
    // Predicated region
    $region10: #{tpu_custom_call.1} parent=1 // pred_check
      _
    $region11: #{tpu_custom_call.1} parent=1 // pred_check_branch
      %17 = sbr.rel (0) target = $region13
    $region12: #{tpu_custom_call.1} parent=1 // pred_region
      _
    $region13: #{tpu_custom_call.1} parent=1 // pred_fallthru
      _
    %v18 = vld [vmem:[%s1] sm:$0xff]
    %v19 = vld [vmem:[%s1 + $0x8] sm:$0xff]
    %v20 = vld [vmem:[%s0] sm:$0xff]
    %v21 = vld [vmem:[%s0 + $0x8] sm:$0xff]
    %v22 = vld [vmem:[%s0 + $0x10] sm:$0xff]
    %v23 = vld [vmem:[%s0 + $0x18] sm:$0xff]
    %v24 = vld [vmem:[%s0 + $0x20] sm:$0xff]
    %v25 = vld [vmem:[%s0 + $0x28] sm:$0xff]
    %v26 = vld [vmem:[%s0 + $0x30] sm:$0xff]
    %v27 = vld [vmem:[%s0 + $0x38] sm:$0xff]
    %vm28 = vcmask 195584
    %v30 = vsel %vm28, %v18, 0
    %v33 = vsel %vm28, %v19, 0
    %v36 = vsel %vm28, %v20, 0
    %v39 = vsel %vm28, %v21, 0
    %v42 = vsel %vm28, %v22, 0
    %v45 = vsel %vm28, %v23, 0
    %v48 = vsel %vm28, %v24, 0
    %v51 = vsel %vm28, %v25, 0
    %v54 = vsel %vm28, %v26, 0
    %v57 = vsel %vm28, %v27, 0
    %59 = vmatprep.subr.mxu0 0.0
    %60 = vmatpush1.xpose.msra.mxu0 %v36
    %61 = vmatprep.subr.mxu0 0.0
    %62 = vmatpush1.xpose.msra.mxu0 %v39
    %63 = vmatprep.subr.mxu0 0.0
    %64 = vmatpush1.xpose.msra.mxu0 %v42
    %65 = vmatprep.subr.mxu0 0.0
    %66 = vmatpush1.xpose.msra.mxu0 %v45
    %67 = vmatprep.subr.mxu0 0.0
    %68 = vmatpush1.xpose.msra.mxu0 %v48
    %69 = vmatprep.subr.mxu0 0.0
    %70 = vmatpush1.xpose.msra.mxu0 %v51
    %71 = vmatprep.subr.mxu0 0.0
    %72 = vmatpush1.xpose.msra.mxu0 %v54
    %73 = vmatprep.subr.mxu0 0.0
    %74 = vmatpush1.xpose.msra.mxu0 %v57
    %75 = vmatprep.subr.mxu0 0.0
    %76 = vmatpush1.xpose.msra.mxu0 0.0
    %77 = vmatprep.subr.mxu0 0.0
    %78 = vmatpush1.xpose.msra.mxu0 0.0
    %79 = vmatprep.subr.mxu0 0.0
    %80 = vmatpush1.xpose.msra.mxu0 0.0
    %81 = vmatprep.subr.mxu0 0.0
    %82 = vmatpush1.xpose.msra.mxu0 0.0
    %83 = vmatprep.subr.mxu0 0.0
    %84 = vmatpush1.xpose.msra.mxu0 0.0
    %85 = vmatprep.subr.mxu0 0.0
    %86 = vmatpush1.xpose.msra.mxu0 0.0
    %87 = vmatprep.subr.mxu0 0.0
    %88 = vmatpush1.xpose.msra.mxu0 0.0
    %89 = vmatprep.subr.mxu0 0.0
    %90 = vmatpush1.xpose.msra.mxu0 0.0
    %91 = vmatprep.subr.mxu0 0.0
    %92 = vmatpush1.xpose.msra.mxu0 0.0
    %93 = vmatprep.subr.mxu0 0.0
    %94 = vmatpush1.xpose.msra.mxu0 0.0
    %95 = vmatprep.subr.mxu0 0.0
    %96 = vmatpush1.xpose.msra.mxu0 0.0
    %97 = vmatprep.subr.mxu0 0.0
    %98 = vmatpush1.xpose.msra.mxu0 0.0
    %99 = vmatprep.subr.mxu0 0.0
    %100 = vmatpush1.xpose.msra.mxu0 0.0
    %101 = vmatprep.subr.mxu0 0.0
    %102 = vmatpush1.xpose.msra.mxu0 0.0
    %103 = vmatprep.subr.mxu0 0.0
    %104 = vmatpush1.xpose.msra.mxu0 0.0
    %105 = vmatprep.subr.mxu0 0.0
    %106 = vmatpush1.xpose.msra.mxu0 0.0
    %107 = vmatprep.subr.mxu0 0.0
    %108 = vmatpush1.xpose.msra.mxu0 0.0
    %109 = vmatprep.subr.mxu0 0.0
    %110 = vmatpush1.xpose.msra.mxu0 0.0
    %111 = vmatprep.subr.mxu0 0.0
    %112 = vmatpush1.xpose.msra.mxu0 0.0
    %113 = vmatprep.subr.mxu0 0.0
    %114 = vmatpush1.xpose.msra.mxu0 0.0
    %115 = vmatprep.subr.mxu0 0.0
    %116 = vmatpush1.xpose.msra.mxu0 0.0
    %117 = vmatprep.subr.mxu0 0.0
    %118 = vmatpush1.xpose.msra.mxu0 0.0
    %119 = vmatprep.subr.mxu0 0.0
    %120 = vmatpush1.xpose.msra.mxu0 0.0
    %121 = vmatprep.subr.mxu0 0.0
    %122 = vmatpush1.xpose.msra.mxu0 0.0
    %123 = vmatprep.mubr.f32.mxu0 0.0
    %124 = vmatmul.mubr.f32.gmra.mrb[0].mxu0 %v30
    %v125 = vpop.f32.mrb[0].mxu0
    %v126 = vadd.f32 0.0, %v125
    %v127 = vpop.f32.mrb[0].mxu0
    %128 = vmatprep.mubr.f32.mxu0 0.0
    %129 = vmatmul.mubr.f32.gmra.mrb[0].mxu0 %v33
    %v130 = vpop.f32.mrb[0].mxu0
    %v131 = vadd.f32 0.0, %v130
    %v132 = vpop.f32.mrb[0].mxu0
    %133 = vdwg.mxu0
    %vm134 = vcmask 523264
    %v135 = vsel %vm134, %v126, -inf
    %136 = vmax.xlane.f32.xlu0 %v135
    %v137 = vpop.xlane.xlu0 %136
    %v138 = vsel %vm134, %v131, -inf
    %139 = vmax.xlane.f32.xlu0 %v138
    %v140 = vpop.xlane.xlu0 %139
    %v141 = vsub.f32 %v126, %v137
    %v142 = vsub.f32 %v131, %v140
    %v143 = vmul.f32 %v141, 1.442695
    %v144 = vpow.pop %v143
    %v145 = vmul.f32 %v142, 1.442695
    %v146 = vpow.pop %v145
    %v147 = vsel %vm134, %v144, 0.0
    %148 = vadd.xlane.f32.xlu0 %v147
    %v149 = vpop.xlane.xlu0 %148
    %v150 = vsel %vm134, %v146, 0.0
    %151 = vadd.xlane.f32.xlu0 %v150
    %v152 = vpop.xlane.xlu0 %151
    %v153 = vrcp.pop %v149
    %v154 = vmul.f32 %v144, %v153
    %v155 = vrcp.pop %v152
    %v156 = vmul.f32 %v146, %v155
    %157 = vst.msk [vmem:[#allocation2] sm:$0xff] %vm134, %v154
    %158 = vst.msk [vmem:[#allocation2 + $0x8] sm:$0xff] %vm134, %v156
    %v159 = vld [vmem:[%s2] sm:$0xff]
    %v160 = vld [vmem:[%s2 + $0x8] sm:$0xff]
    %vm161 = vcmp.gt.f32.partialorder %v159, 0.0
    %vm162 = vcmp.gt.f32.partialorder %v160, 0.0
    %v163 = vsel %vm161, %v154, 0.0
    %v164 = vsel %vm162, %v156, 0.0
    %v165 = vsub.f32 %v159, %v163
    %v166 = vsub.f32 %v160, %v164
    %v167 = vmul.f32 %v165, %v165
    %v168 = vmul.f32 %v166, %v166
    %v169 = vsel %vm134, %v167, 0.0
    %170 = vadd.xlane.f32.xlu0 %v169
    %v171 = vpop.xlane.xlu0 %170
    %v172 = vsel %vm134, %v168, 0.0
    %173 = vadd.xlane.f32.xlu0 %v172
    %v174 = vpop.xlane.xlu0 %173
    %v177 = vlaneseq
    %v178 = vand.u32 %v177, 127
    %v179 = vlaneseq
    %v180 = vshrl.u32 %v179, 7
    %v181 = vsub.s32 %v178, %v180
    %v182 = vrot.slane %v171, %v181
    %v183 = vadd.s32 %v178, 4294967288
    %v184 = vlaneseq
    %v185 = vshrl.u32 %v184, 7
    %v186 = vsub.s32 %v183, %v185
    %v187 = vrot.slane %v174, %v186
    %vm188 = vcmask 130112
    %v189 = vsel %vm188, %v187, %v182
    %vm191 = vcmask 122880
    %192 = vst.msk [vmem:[#allocation4] sm:$0x1] %vm191, %v189
    // Predicated region
    $region14: #{tpu_custom_call.1} parent=1 // pred_check
      _
    $region15: #{tpu_custom_call.1} parent=1 // pred_check_branch
      %194 = sbr.rel (0) target = $region17
    $region16: #{tpu_custom_call.1} parent=1 // pred_region
      %s196 = ssub.s32 256, 256
      %197 = vsyncadd [#allocation3], %s196
      %s198 = sshll.u32 [#allocation2], 4
      %s199 = int_to_ptr.vmem [resolvable:$true] %s198
      %204 = dma.vmem_to_hbm [thread:$0]  %s199, 256, %s3, [#allocation3], 128, 128, 8
    $region17: #{tpu_custom_call.1} parent=1 // pred_fallthru
      _
    // Predicated region
    $region18: #{tpu_custom_call.1} parent=1 // pred_check
      _
    $region19: #{tpu_custom_call.1} parent=1 // pred_check_branch
      %206 = sbr.rel (0) target = $region21
    $region20: #{tpu_custom_call.1} parent=1 // pred_region
      %s208 = ssub.s32 16, 16
      %209 = vsyncadd [#allocation5], %s208
      %s211 = sshll.u32 [#allocation4], 4
      %s212 = int_to_ptr.vmem [resolvable:$true] %s211
      %214 = dma.vmem_to_hbm [thread:$0]  %s212, 16, %s4, [#allocation5]
    $region21: #{tpu_custom_call.1} parent=1 // pred_fallthru
      _
    // Predicated region
    $region22: #{tpu_custom_call.1} parent=1 // pred_check
      _
    $region23: #{tpu_custom_call.1} parent=1 // pred_check_branch
      %216 = sbr.rel (0) target = $region25
    $region24: #{tpu_custom_call.1} parent=1 // pred_region
      %217 = dma.done [#allocation3], 256
    $region25: #{tpu_custom_call.1} parent=1 // pred_fallthru
      _
    // Predicated region
    $region26: #{tpu_custom_call.1} parent=1 // pred_check
      _
    $region27: #{tpu_custom_call.1} parent=1 // pred_check_branch
      %219 = sbr.rel (0) target = $region29
    $region28: #{tpu_custom_call.1} parent=1 // pred_region
      %220 = dma.done [#allocation5], 16
    $region29: #{tpu_custom_call.1} parent=1 // pred_fallthru
      _
    %221 = vsyncpa [#allocation3], 1
    %222 = vsyncpa [#allocation5], 1

</llo_original>
